<compile_context>
chip_gen: v5e
topology: v5e:2x2
jax: 0.10.0
libtpu: 0.0.40
codegen_flags: <defaults>
</compile_context>

<pallas_src>
import functools

import jax
import jax.numpy as jnp
import numpy as np
from jax import lax
from jax.experimental import pallas as pl
from jax.experimental.pallas import tpu as pltpu


# --------------------------------- kernel body ---------------------------------------
def _up2x_kernel(*refs, has_high):
    # refs (has_high=True):  x_ref, b_ref, mw_ref, xh_ref, o_ref
    # refs (has_high=False): x_ref, b_ref, mw_ref,         o_ref
    if has_high:
        x_ref, b_ref, mw_ref, xh_ref, o_ref = refs
    else:
        x_ref, b_ref, mw_ref, o_ref = refs
        xh_ref = None

    bN, H, CW = x_ref.shape          # batch block, rows, Cin*W
    OW2 = mw_ref.shape[1]            # Cout*2W
    M = bN * H
    cdt = b_ref.dtype                # MXU operand dtype (bf16 by default)

    # ---- conv3x3 (pad=1, no bias) as ONE matmul: M = bN*H, K = 3*Cin*W ---------------
    # The three kernel-row bands (x[h-1], x[h], x[h+1]) are laid side-by-side along the
    # lane dim; the per-image H-boundary zeros come from register-level concats (no
    # scratch, no halo init, no HBM pad pass).  The W boundary is folded into B.
    xv = x_ref[...].astype(cdt)                                        # (bN, H, CW)
    zrow = jnp.zeros((bN, 1, CW), cdt)
    band_up = jnp.concatenate([zrow, xv[:, : H - 1, :]], axis=1)       # x[b, h-1] (0 at top)
    band_dn = jnp.concatenate([xv[:, 1:, :], zrow], axis=1)            # x[b, h+1] (0 at bottom)
    lhs = jnp.concatenate([band_up, xv, band_dn], axis=2).reshape(M, 3 * CW)
    acc = jnp.dot(lhs, b_ref[...], preferred_element_type=jnp.float32)  # (M, Cout*W) f32
    y = jnp.clip(acc, 0.0, 1.0).astype(mw_ref.dtype)                   # hardtanh(0, 1)

    # ---- 2x bilinear along W (+ channel interleave) as one matmul vs block-diag Mw ---
    zw = jnp.dot(y, mw_ref[...], preferred_element_type=jnp.float32)   # (M, Cout*2W) f32
    z = zw.reshape(bN, H, OW2)

    # ---- 2x bilinear along H on the VPU (align_corners=False, edge clamped) ----------
    #   even output rows (2h)  : 0.75*z[h] + 0.25*z[max(h-1, 0)]
    #   odd  output rows (2h+1): 0.75*z[h] + 0.25*z[min(h+1, H-1)]
    z_up = jnp.concatenate([z[:, :1, :], z[:, : H - 1, :]], axis=1)
    z_dn = jnp.concatenate([z[:, 1:, :], z[:, H - 1 :, :]], axis=1)
    out_even = 0.75 * z + 0.25 * z_up
    out_odd = 0.75 * z + 0.25 * z_dn

    if has_high:                                                        # skip add + clip
        out_even = jnp.clip(out_even + xh_ref[0].astype(jnp.float32), 0.0, 1.0)
        out_odd = jnp.clip(out_odd + xh_ref[1].astype(jnp.float32), 0.0, 1.0)

    # Two contiguous lane-dense planes (even rows / odd rows); interleaving to NCHW is
    # fused into the wrapper-side transpose that was required anyway.
    o_ref[0] = out_even.astype(o_ref.dtype)
    o_ref[1] = out_odd.astype(o_ref.dtype)


# ------------------------------ constant preparation ---------------------------------
def _up2_matrix(n):
    """(n, 2n) matrix matching torch 2x bilinear, align_corners=False (edge clamped)."""
    u = np.zeros((n, 2 * n), np.float32)
    for j in range(n):
        u[max(j - 1, 0), 2 * j] += 0.25
        u[j, 2 * j] += 0.75
        u[j, 2 * j + 1] += 0.75
        u[min(j + 1, n - 1), 2 * j + 1] += 0.25
    return u


def up2x_prepare(weight, W, param_dtype=jnp.bfloat16):
    """Fold conv weights / W-upsample into constant matrices ONCE per weight (host-side).

    Returns:
      b_full: (3*Cin*W, Cout*W)   folded 3x3 conv; the W dim is absorbed into K/N and the
              three kernel rows are stacked along K to match the in-kernel band layout.
      mw:     (Cout*W, 2*Cout*W)  kron(I_Cout, Uw): bilinear-2x W blend + channel interleave.
    """
    w_np = np.asarray(jax.device_get(weight), np.float32)               # (Cout, Cin, 3, 3)
    Cout, Cin = w_np.shape[0], w_np.shape[1]
    dxs, wi, wo = np.arange(3), np.arange(W), np.arange(W)
    # sel[x, i, o] = 1  iff  i - o + 1 == x  (conv tap inside the W boundary)
    sel = (wi[None, :, None] - wo[None, None, :] + 1 == dxs[:, None, None]).astype(np.float32)
    b_full = np.einsum("ocyx,xiw->yciow", w_np, sel).reshape(3 * Cin * W, Cout * W)
    mw = np.kron(np.eye(Cout, dtype=np.float32), _up2_matrix(W))        # (Cout*W, 2*Cout*W)
    return jnp.asarray(b_full, param_dtype), jnp.asarray(mw, param_dtype)


# ----------------------------------- wrapper ------------------------------------------
def _pick_batch_block(n, per_image_bytes, budget=6 << 20):
    """Largest divisor of n (<= 8) whose per-step live footprint stays under `budget`."""
    cap = max(1, int(budget // max(per_image_bytes, 1)))
    best = 1
    for cand in range(2, min(n, 8, cap) + 1):
        if n % cand == 0:
            best = cand
    return best


def up2x_forward(x_low, b_full, mw, x_high=None):
    """x_low: (N, Cin, H, W); b_full/mw from up2x_prepare; x_high: (N, Cout, 2H, 2W) or None."""
    N, Cin, H, W = x_low.shape
    KW, OW = b_full.shape
    OW2 = mw.shape[1]
    Cout = OW // W
    assert KW == 3 * Cin * W and mw.shape[0] == OW and OW2 == 2 * OW
    CW = Cin * W
    out_dtype = x_low.dtype
    esz = jnp.dtype(out_dtype).itemsize
    has_high = x_high is not None

    # Batch-block the grid (fatter matmul M, amortised per-step pipeline overhead).
    per_img = H * CW * esz + 10 * H * OW2 * 4 + (4 if has_high else 2) * 2 * H * OW2 * esz
    bN = _pick_batch_block(N, per_img)

    # Outer-dim-only transposes (W stays minor -> cheap HBM relayouts).
    x2d = jnp.transpose(x_low, (0, 2, 1, 3)).reshape(N, H, CW)           # [n, h, c*W + w]

    inputs = [x2d, b_full, mw]
    in_specs = [
        pl.BlockSpec((bN, H, CW), lambda n: (n, 0, 0)),
        # grid-invariant constants: fetched once, single-buffered
        pl.BlockSpec((KW, OW), lambda n: (0, 0), pipeline_mode=pl.Buffered(1)),
        pl.BlockSpec((OW, OW2), lambda n: (0, 0), pipeline_mode=pl.Buffered(1)),
    ]
    if has_high:
        # even/odd row planes: xhp[p, n, h, o*2W + w2] = x_high[n, o, 2h + p, w2]
        xhp = jnp.transpose(x_high.reshape(N, Cout, H, 2, 2 * W),
                            (3, 0, 2, 1, 4)).reshape(2, N, H, OW2)
        inputs.append(xhp)
        in_specs.append(pl.BlockSpec((2, bN, H, OW2), lambda n: (0, n, 0, 0)))

    kernel = functools.partial(_up2x_kernel, has_high=has_high)

    # Explicit VMEM budget: double-buffered x/xh/out blocks + single-buffered constants
    # + f32 live intermediates (rough), with margin.
    vmem = (2 * bN * H * CW * esz
            + (KW * OW + OW * OW2) * jnp.dtype(b_full.dtype).itemsize
            + (2 if has_high else 1) * 2 * (2 * bN * H * OW2) * esz
            + 12 * bN * H * OW2 * 4)
    vmem_limit = min(max(int(1.5 * vmem) + (2 << 20), 16 << 20), 64 << 20)

    outp = pl.pallas_call(
        kernel,
        out_shape=jax.ShapeDtypeStruct((2, N, H, OW2), out_dtype),
        grid_spec=pltpu.PrefetchScalarGridSpec(
            num_scalar_prefetch=0,
            grid=(N // bN,),
            in_specs=in_specs,
            out_specs=pl.BlockSpec((2, bN, H, OW2), lambda n: (0, n, 0, 0)),
        ),
        compiler_params=pltpu.CompilerParams(
            dimension_semantics=("parallel",),
            vmem_limit_bytes=vmem_limit,
        ),
    )(*inputs)

    # (2, N, H, Cout*2W): plane 0 = even rows, plane 1 = odd rows.  The interleave rides
    # the (single, minor-dim-preserving) NCHW transpose that was needed anyway.
    out = jnp.transpose(outp.reshape(2, N, H, Cout, 2 * W), (1, 3, 2, 0, 4))
    return out.reshape(N, Cout, 2 * H, 2 * W)


# ----------------------- pure-JAX reference (for verification) ------------------------
def _bilinear_up2x_ref(x):  # NHWC, matches torch interpolate(scale=2, bilinear, align_corners=False)
    N, H, W, C = x.shape

    def make_idx(in_size):
        o = jnp.arange(2 * in_size, dtype=jnp.float32)
        src = jnp.maximum((o + 0.5) * 0.5 - 0.5, 0.0)
        i0 = jnp.floor(src).astype(jnp.int32)
        frac = src - i0.astype(jnp.float32)
        i1 = jnp.minimum(i0 + 1, in_size - 1)
        return i0, i1, frac

    h0, h1, fh = make_idx(H)
    w0, w1, fw = make_idx(W)
    xh = x[:, h0] * (1 - fh)[None, :, None, None] + x[:, h1] * fh[None, :, None, None]
    return (xh[:, :, w0] * (1 - fw)[None, None, :, None]
            + xh[:, :, w1] * fw[None, None, :, None])


def up2x_ref(x_low, weight, x_high=None):
    x = jnp.transpose(x_low, (0, 2, 3, 1))
    w = jnp.transpose(weight, (2, 3, 1, 0))
    y = lax.conv_general_dilated(x, w, (1, 1), "SAME",
                                 dimension_numbers=("NHWC", "HWIO", "NHWC"))
    y = jnp.clip(y, 0.0, 1.0)
    y = _bilinear_up2x_ref(y)
    if x_high is not None:
        y = jnp.clip(y + jnp.transpose(x_high, (0, 2, 3, 1)), 0.0, 1.0)
    return jnp.transpose(y, (0, 3, 1, 2))


if __name__ == "__main__":
    key = jax.random.PRNGKey(0)
    k1, k2, k3 = jax.random.split(key, 3)
    N, Cin, Cout, H, W = 2, 4, 8, 16, 16

    x_low = jax.random.uniform(k1, (N, Cin, H, W), jnp.float32)
    x_high = jax.random.uniform(k2, (N, Cout, 2 * H, 2 * W), jnp.float32)
    weight = jax.random.normal(k3, (Cout, Cin, 3, 3), jnp.float32) * (2.0 / (Cin * 9)) ** 0.5

    # Constants are built ONCE per weight (hoisted out of the per-call traced graph).
    b_full, mw = up2x_prepare(weight, W)

    fwd = jax.jit(up2x_forward)
    out_skip = jax.block_until_ready(fwd(x_low, b_full, mw, x_high))
    out_plain = jax.block_until_ready(fwd(x_low, b_full, mw))

    ref_skip = up2x_ref(x_low, weight, x_high)
    ref_plain = up2x_ref(x_low, weight)

    # bf16 MXU operands (x, B, Mw) with f32 accumulation: ~1e-2 abs error vs the f32
    # reference is expected (per perf review); interpolation coefficients are exact.
    np.testing.assert_allclose(np.asarray(out_skip), np.asarray(ref_skip),
                               atol=3e-2, rtol=3e-2)
    np.testing.assert_allclose(np.asarray(out_plain), np.asarray(ref_plain),
                               atol=3e-2, rtol=3e-2)
    assert out_skip.shape == (N, Cout, 2 * H, 2 * W)
    assert out_plain.shape == (N, Cout, 2 * H, 2 * W)
    print("KERNEL_OK")
</pallas_src>

<mosaic_0001>
module attributes {stable_mosaic.version = 11 : i64} {
  func.func @_up2x_kernel(%arg0: i32, %arg1: memref<2x16x64xf32, #tpu.memory_space<vmem>>, %arg2: memref<192x128xbf16, #tpu.memory_space<vmem>>, %arg3: memref<128x256xbf16, #tpu.memory_space<vmem>>, %arg4: memref<2x2x16x256xf32, #tpu.memory_space<vmem>>, %arg5: memref<2x2x16x256xf32, #tpu.memory_space<vmem>>) attributes {dimension_semantics = [#tpu.dimension_semantics<parallel>], iteration_bounds = array<i64: 1>, scalar_prefetch = 0 : i64, scratch_operands = 0 : i64, tpu.core_type = #tpu.core_type<tc>, window_params = [{transform_indices = @transform_0, window_bounds = array<i64: 2, 16, 64>}, {pipeline_mode = #tpu.pipeline_mode<synchronous>, transform_indices = @transform_1, window_bounds = array<i64: 192, 128>}, {pipeline_mode = #tpu.pipeline_mode<synchronous>, transform_indices = @transform_2, window_bounds = array<i64: 128, 256>}, {transform_indices = @transform_3, window_bounds = array<i64: 2, 2, 16, 256>}, {transform_indices = @transform_4, window_bounds = array<i64: 2, 2, 16, 256>}]} {
    %c0 = arith.constant 0 : index
    %c0_0 = arith.constant 0 : index
    %c0_1 = arith.constant 0 : index
    %0 = vector.load %arg1[%c0, %c0_0, %c0_1] : memref<2x16x64xf32, #tpu.memory_space<vmem>>, vector<2x16x64xf32>
    %1 = arith.truncf %0 : vector<2x16x64xf32> to vector<2x16x64xbf16>
    %cst = arith.constant 0.000000e+00 : bf16
    %2 = vector.broadcast %cst : bf16 to vector<2x1x64xbf16>
    %3 = vector.extract_strided_slice %1 {offsets = [0, 0, 0], sizes = [2, 15, 64], strides = [1, 1, 1]} : vector<2x16x64xbf16> to vector<2x15x64xbf16>
    %4 = tpu.concatenate %2, %3 in 1 : vector<2x1x64xbf16>, vector<2x15x64xbf16> -> vector<2x16x64xbf16>
    %5 = vector.extract_strided_slice %1 {offsets = [0, 1, 0], sizes = [2, 15, 64], strides = [1, 1, 1]} : vector<2x16x64xbf16> to vector<2x15x64xbf16>
    %6 = tpu.concatenate %5, %2 in 1 : vector<2x15x64xbf16>, vector<2x1x64xbf16> -> vector<2x16x64xbf16>
    %7 = tpu.concatenate %4, %1, %6 in 2 : vector<2x16x64xbf16>, vector<2x16x64xbf16>, vector<2x16x64xbf16> -> vector<2x16x192xbf16>
    %8 = vector.shape_cast %7 : vector<2x16x192xbf16> to vector<32x192xbf16>
    %c0_2 = arith.constant 0 : index
    %c0_3 = arith.constant 0 : index
    %9 = vector.load %arg2[%c0_2, %c0_3] : memref<192x128xbf16, #tpu.memory_space<vmem>>, vector<192x128xbf16>
    %cst_4 = arith.constant dense<0.000000e+00> : vector<32x128xf32>
    %10 = tpu.matmul %8, %9, %cst_4 {dimension_numbers = #tpu.dot_dimension_numbers<[1], [0], [0], [1], [0, 0, 1, 1], [], []>} : vector<32x192xbf16>, vector<192x128xbf16>, vector<32x128xf32> -> vector<32x128xf32>
    %cst_5 = arith.constant 0.000000e+00 : f32
    %cst_6 = arith.constant 1.000000e+00 : f32
    %11 = vector.broadcast %cst_5 : f32 to vector<32x128xf32>
    %12 = arith.maximumf %11, %10 : vector<32x128xf32>
    %13 = vector.broadcast %cst_6 : f32 to vector<32x128xf32>
    %14 = arith.minimumf %13, %12 : vector<32x128xf32>
    %15 = arith.truncf %14 : vector<32x128xf32> to vector<32x128xbf16>
    %c0_7 = arith.constant 0 : index
    %c0_8 = arith.constant 0 : index
    %16 = vector.load %arg3[%c0_7, %c0_8] : memref<128x256xbf16, #tpu.memory_space<vmem>>, vector<128x256xbf16>
    %cst_9 = arith.constant dense<0.000000e+00> : vector<32x256xf32>
    %17 = tpu.matmul %15, %16, %cst_9 {dimension_numbers = #tpu.dot_dimension_numbers<[1], [0], [0], [1], [0, 0, 1, 1], [], []>} : vector<32x128xbf16>, vector<128x256xbf16>, vector<32x256xf32> -> vector<32x256xf32>
    %18 = vector.shape_cast %17 : vector<32x256xf32> to vector<2x16x256xf32>
    %19 = vector.extract_strided_slice %18 {offsets = [0, 0, 0], sizes = [2, 1, 256], strides = [1, 1, 1]} : vector<2x16x256xf32> to vector<2x1x256xf32>
    %20 = vector.extract_strided_slice %18 {offsets = [0, 0, 0], sizes = [2, 15, 256], strides = [1, 1, 1]} : vector<2x16x256xf32> to vector<2x15x256xf32>
    %21 = tpu.concatenate %19, %20 in 1 : vector<2x1x256xf32>, vector<2x15x256xf32> -> vector<2x16x256xf32>
    %22 = vector.extract_strided_slice %18 {offsets = [0, 1, 0], sizes = [2, 15, 256], strides = [1, 1, 1]} : vector<2x16x256xf32> to vector<2x15x256xf32>
    %23 = vector.extract_strided_slice %18 {offsets = [0, 15, 0], sizes = [2, 1, 256], strides = [1, 1, 1]} : vector<2x16x256xf32> to vector<2x1x256xf32>
    %24 = tpu.concatenate %22, %23 in 1 : vector<2x15x256xf32>, vector<2x1x256xf32> -> vector<2x16x256xf32>
    %cst_10 = arith.constant 7.500000e-01 : f32
    %25 = vector.broadcast %cst_10 : f32 to vector<2x16x256xf32>
    %26 = arith.mulf %25, %18 : vector<2x16x256xf32>
    %cst_11 = arith.constant 2.500000e-01 : f32
    %27 = vector.broadcast %cst_11 : f32 to vector<2x16x256xf32>
    %28 = arith.mulf %27, %21 : vector<2x16x256xf32>
    %29 = arith.addf %26, %28 : vector<2x16x256xf32>
    %cst_12 = arith.constant 7.500000e-01 : f32
    %30 = vector.broadcast %cst_12 : f32 to vector<2x16x256xf32>
    %31 = arith.mulf %30, %18 : vector<2x16x256xf32>
    %cst_13 = arith.constant 2.500000e-01 : f32
    %32 = vector.broadcast %cst_13 : f32 to vector<2x16x256xf32>
    %33 = arith.mulf %32, %24 : vector<2x16x256xf32>
    %34 = arith.addf %31, %33 : vector<2x16x256xf32>
    %c0_14 = arith.constant 0 : index
    %c0_15 = arith.constant 0 : index
    %c0_16 = arith.constant 0 : index
    %c0_17 = arith.constant 0 : index
    %35 = vector.load %arg4[%c0_14, %c0_15, %c0_16, %c0_17] : memref<2x2x16x256xf32, #tpu.memory_space<vmem>>, vector<1x2x16x256xf32>
    %36 = vector.shape_cast %35 : vector<1x2x16x256xf32> to vector<2x16x256xf32>
    %37 = arith.addf %29, %36 : vector<2x16x256xf32>
    %cst_18 = arith.constant 0.000000e+00 : f32
    %cst_19 = arith.constant 1.000000e+00 : f32
    %38 = vector.broadcast %cst_18 : f32 to vector<2x16x256xf32>
    %39 = arith.maximumf %38, %37 : vector<2x16x256xf32>
    %40 = vector.broadcast %cst_19 : f32 to vector<2x16x256xf32>
    %41 = arith.minimumf %40, %39 : vector<2x16x256xf32>
    %c1 = arith.constant 1 : index
    %c0_20 = arith.constant 0 : index
    %c0_21 = arith.constant 0 : index
    %c0_22 = arith.constant 0 : index
    %42 = vector.load %arg4[%c1, %c0_20, %c0_21, %c0_22] : memref<2x2x16x256xf32, #tpu.memory_space<vmem>>, vector<1x2x16x256xf32>
    %43 = vector.shape_cast %42 : vector<1x2x16x256xf32> to vector<2x16x256xf32>
    %44 = arith.addf %34, %43 : vector<2x16x256xf32>
    %cst_23 = arith.constant 0.000000e+00 : f32
    %cst_24 = arith.constant 1.000000e+00 : f32
    %45 = vector.broadcast %cst_23 : f32 to vector<2x16x256xf32>
    %46 = arith.maximumf %45, %44 : vector<2x16x256xf32>
    %47 = vector.broadcast %cst_24 : f32 to vector<2x16x256xf32>
    %48 = arith.minimumf %47, %46 : vector<2x16x256xf32>
    %c0_25 = arith.constant 0 : index
    %c0_26 = arith.constant 0 : index
    %c0_27 = arith.constant 0 : index
    %c0_28 = arith.constant 0 : index
    %49 = vector.load %arg5[%c0_25, %c0_26, %c0_27, %c0_28] : memref<2x2x16x256xf32, #tpu.memory_space<vmem>>, vector<1x2x16x256xf32>
    %50 = vector.shape_cast %49 : vector<1x2x16x256xf32> to vector<2x16x256xf32>
    %51 = vector.shape_cast %41 : vector<2x16x256xf32> to vector<1x2x16x256xf32>
    tpu.vector_store %arg5[%c0_25, %c0_26, %c0_27, %c0_28], %51 {strides = array<i32>} : memref<2x2x16x256xf32, #tpu.memory_space<vmem>>, vector<1x2x16x256xf32>,
    %c1_29 = arith.constant 1 : index
    %c0_30 = arith.constant 0 : index
    %c0_31 = arith.constant 0 : index
    %c0_32 = arith.constant 0 : index
    %52 = vector.load %arg5[%c1_29, %c0_30, %c0_31, %c0_32] : memref<2x2x16x256xf32, #tpu.memory_space<vmem>>, vector<1x2x16x256xf32>
    %53 = vector.shape_cast %52 : vector<1x2x16x256xf32> to vector<2x16x256xf32>
    %54 = vector.shape_cast %48 : vector<2x16x256xf32> to vector<1x2x16x256xf32>
    tpu.vector_store %arg5[%c1_29, %c0_30, %c0_31, %c0_32], %54 {strides = array<i32>} : memref<2x2x16x256xf32, #tpu.memory_space<vmem>>, vector<1x2x16x256xf32>,
    return
  }
  func.func @transform_0(%arg0: i32) -> (i32, i32, i32) {
    %c0_i32 = arith.constant 0 : i32
    %c0_i32_0 = arith.constant 0 : i32
    %c0_i32_1 = arith.constant 0 : i32
    return %arg0, %c0_i32, %c0_i32_0 : i32, i32, i32
  }
  func.func @transform_1(%arg0: i32) -> (i32, i32) {
    %c0_i32 = arith.constant 0 : i32
    %c0_i32_0 = arith.constant 0 : i32
    %c0_i32_1 = arith.constant 0 : i32
    return %c0_i32, %c0_i32_0 : i32, i32
  }
  func.func @transform_2(%arg0: i32) -> (i32, i32) {
    %c0_i32 = arith.constant 0 : i32
    %c0_i32_0 = arith.constant 0 : i32
    %c0_i32_1 = arith.constant 0 : i32
    return %c0_i32, %c0_i32_0 : i32, i32
  }
  func.func @transform_3(%arg0: i32) -> (i32, i32, i32, i32) {
    %c0_i32 = arith.constant 0 : i32
    %c0_i32_0 = arith.constant 0 : i32
    %c0_i32_1 = arith.constant 0 : i32
    %c0_i32_2 = arith.constant 0 : i32
    return %c0_i32, %arg0, %c0_i32_0, %c0_i32_1 : i32, i32, i32, i32
  }
  func.func @transform_4(%arg0: i32) -> (i32, i32, i32, i32) {
    %c0_i32 = arith.constant 0 : i32
    %c0_i32_0 = arith.constant 0 : i32
    %c0_i32_1 = arith.constant 0 : i32
    %c0_i32_2 = arith.constant 0 : i32
    return %c0_i32, %arg0, %c0_i32_0, %c0_i32_1 : i32, i32, i32, i32
  }
}

</mosaic_0001>

<llo_original>
// kernel: up2x_forward.1
$region0: #{up2x_forward.1}
  #allocation0 [shape = 'u32[]', space=smem, size = 0x4, offset = 0x4, fixed_abs, tag = 'smem constant byte address 0x4 - core index']
  #allocation1 [shape = 'u32[72,128]{1,0:T(1,128)}', space=vmem, size = 0x9000, scoped, tag = 'internal scratch']
  %s0 = inlined_call_operand.vmem [shape: f32[2,16,64], index: 0, kind: input, shape index: {}]
  %s1 = inlined_call_operand.vmem [shape: bf16[192,128], index: 1, kind: input, shape index: {}]
  %s2 = inlined_call_operand.vmem [shape: bf16[128,256], index: 2, kind: input, shape index: {}]
  %s3 = inlined_call_operand.vmem [shape: f32[2,2,16,256], index: 3, kind: input, shape index: {}]
  %s4 = inlined_call_operand.vmem [shape: f32[2,2,16,256], index: 4, kind: output, shape index: {}]
  %s5 = sld [smem:[#allocation0]]
  $region26: #{up2x_forward.1} parent=0
    _
  %s7 = ssub.s32 1, %s5
  %s8 = scalar_select 0, %s7, %s5
  // Predicated region
  $region2: #{up2x_forward.1} parent=0 // pred_check
    _
  $region3: #{up2x_forward.1} parent=0 // pred_check_branch
    %10 = sbr.rel (0) target = $region5
  $region4: #{up2x_forward.1} parent=0 // pred_region
    _
  $region5: #{up2x_forward.1} parent=0 // pred_fallthru
    _
  // Predicated region
  $region6: #{up2x_forward.1} parent=0 // pred_check
    _
  $region7: #{up2x_forward.1} parent=0 // pred_check_branch
    %12 = sbr.rel (0) target = $region9
  $region8: #{up2x_forward.1} parent=0 // pred_region
    _
  $region9: #{up2x_forward.1} parent=0 // pred_fallthru
    _
  // Predicated region
  $region10: #{up2x_forward.1} parent=0 // pred_check
    _
  $region11: #{up2x_forward.1} parent=0 // pred_check_branch
    %14 = sbr.rel (0) target = $region13
  $region12: #{up2x_forward.1} parent=0 // pred_region
    _
  $region13: #{up2x_forward.1} parent=0 // pred_fallthru
    _
  // Predicated region
  $region14: #{up2x_forward.1} parent=0 // pred_check
    _
  $region15: #{up2x_forward.1} parent=0 // pred_check_branch
    %16 = sbr.rel (0) target = $region17
  $region16: #{up2x_forward.1} parent=0 // pred_region
    _
  $region17: #{up2x_forward.1} parent=0 // pred_fallthru
    _
  %v18 = vld [vmem:[%s0] sm:$0xff]
  %v19 = vld [vmem:[%s0 + $0x8] sm:$0xff]
  %v20 = vld [vmem:[%s0 + $0x10] sm:$0xff]
  %v21 = vld [vmem:[%s0 + $0x18] sm:$0xff]
  %v22 = vpack.c.bf16 %v18, %v18
  %v23 = vpack.c.bf16 %v19, %v19
  %v24 = vpack.c.bf16 %v20, %v20
  %v25 = vpack.c.bf16 %v21, %v21
  %v30 = vunpack.c.l.b16 %v22
  %v31 = vunpack.c.l.b16 %v23
  %v32 = vunpack.c.l.b16 %v24
  %v33 = vunpack.c.l.b16 %v25
  %v34 = vpack.c.b16 %v31, %v30
  %v35 = vpack.c.b16 %v33, %v32
  %v37 = vshrl.u32 %v34, 16
  %v39 = vrot.slane %v37, 7
  %v40 = vshll.u32 %v34, 16
  %v42 = vor.u32 %v39, %v40
  %v44 = vshrl.u32 %v35, 16
  %v46 = vrot.slane %v44, 7
  %v47 = vshll.u32 %v35, 16
  %v49 = vor.u32 %v46, %v47
  %vm52 = vcmask 1040384
  %vm53 = vsmask.f32 256
  %vm54 = vmand %vm52, %vm53
  %v55 = vsel %vm54, 0, %v42
  %v56 = vsel %vm54, 0, %v49
  %v57 = vrot.slane %v40, 1
  %v58 = vor.u32 %v37, %v57
  %v59 = vrot.slane %v47, 1
  %v60 = vor.u32 %v44, %v59
  %vm63 = vcmask 1047552
  %vm64 = vsmask.f32 7424
  %vm65 = vmand %vm63, %vm64
  %v66 = vsel %vm65, %v58, 0
  %v67 = vsel %vm65, %v60, 0
  %68 = vrot.lane.b32.xlu0 %v34, 64
  %v69 = vpop.permute.xlu0 %68
  %70 = vrot.lane.b32.xlu0 %v35, 64
  %v71 = vpop.permute.xlu0 %70
  %vm72 = vcmask 523264
  %v75 = vsel %vm72, %v55, %v69
  %v79 = vsel %vm72, %v56, %v71
  %v81 = vld [vmem:[%s1] sm:$0xf]
  %v82 = vld [vmem:[%s1 + $0x4] sm:$0xf]
  %v83 = vld [vmem:[%s1 + $0x8] sm:$0xf]
  %v84 = vld [vmem:[%s1 + $0xc] sm:$0xf]
  %v85 = vld [vmem:[%s1 + $0x10] sm:$0xf]
  %v86 = vld [vmem:[%s1 + $0x14] sm:$0xf]
  %v87 = vld [vmem:[%s1 + $0x18] sm:$0xf]
  %v88 = vld [vmem:[%s1 + $0x1c] sm:$0xf]
  %v89 = vld [vmem:[%s1 + $0x20] sm:$0xf]
  %v90 = vld [vmem:[%s1 + $0x24] sm:$0xf]
  %v91 = vld [vmem:[%s1 + $0x28] sm:$0xf]
  %v92 = vld [vmem:[%s1 + $0x2c] sm:$0xf]
  %v93 = vld [vmem:[%s1 + $0x30] sm:$0xf]
  %v94 = vld [vmem:[%s1 + $0x34] sm:$0xf]
  %v95 = vld [vmem:[%s1 + $0x38] sm:$0xf]
  %v96 = vld [vmem:[%s1 + $0x3c] sm:$0xf]
  %v97 = vld [vmem:[%s1 + $0x40] sm:$0xf]
  %v98 = vld [vmem:[%s1 + $0x44] sm:$0xf]
  %v99 = vld [vmem:[%s1 + $0x48] sm:$0xf]
  %v100 = vld [vmem:[%s1 + $0x4c] sm:$0xf]
  %v101 = vld [vmem:[%s1 + $0x50] sm:$0xf]
  %v102 = vld [vmem:[%s1 + $0x54] sm:$0xf]
  %v103 = vld [vmem:[%s1 + $0x58] sm:$0xf]
  %v104 = vld [vmem:[%s1 + $0x5c] sm:$0xf]
  %v129 = vunpack.c.l.b16 %v81
  %v130 = vunpack.c.l.b16 %v82
  %v131 = vunpack.c.l.b16 %v83
  %v132 = vunpack.c.l.b16 %v84
  %v133 = vunpack.c.l.b16 %v85
  %v134 = vunpack.c.l.b16 %v86
  %v135 = vunpack.c.l.b16 %v87
  %v136 = vunpack.c.l.b16 %v88
  %v137 = vunpack.c.l.b16 %v89
  %v138 = vunpack.c.l.b16 %v90
  %v139 = vunpack.c.l.b16 %v91
  %v140 = vunpack.c.l.b16 %v92
  %v141 = vunpack.c.l.b16 %v93
  %v142 = vunpack.c.l.b16 %v94
  %v143 = vunpack.c.l.b16 %v95
  %v144 = vunpack.c.l.b16 %v96
  %v145 = vunpack.c.l.b16 %v97
  %v146 = vunpack.c.l.b16 %v98
  %v147 = vunpack.c.l.b16 %v99
  %v148 = vunpack.c.l.b16 %v100
  %v149 = vunpack.c.l.b16 %v101
  %v150 = vunpack.c.l.b16 %v102
  %v151 = vunpack.c.l.b16 %v103
  %v152 = vunpack.c.l.b16 %v104
  %v153 = vpack.c.b16 %v130, %v129
  %v154 = vpack.c.b16 %v132, %v131
  %v155 = vpack.c.b16 %v134, %v133
  %v156 = vpack.c.b16 %v136, %v135
  %v157 = vpack.c.b16 %v138, %v137
  %v158 = vpack.c.b16 %v140, %v139
  %v159 = vpack.c.b16 %v142, %v141
  %v160 = vpack.c.b16 %v144, %v143
  %v161 = vpack.c.b16 %v146, %v145
  %v162 = vpack.c.b16 %v148, %v147
  %v163 = vpack.c.b16 %v150, %v149
  %v164 = vpack.c.b16 %v152, %v151
  %v178 = vsel %vm72, %v66, 0
  %v181 = vsel %vm72, %v67, 0
  %183 = vmatpush.bf16.msra.mxu0 %v160
  %184 = vmatpush.bf16.msra.mxu0 %v159
  %185 = vmatpush.bf16.msra.mxu0 %v158
  %186 = vmatpush.bf16.msra.mxu0 %v157
  %187 = vmatpush.bf16.msra.mxu0 %v156
  %188 = vmatpush.bf16.msra.mxu0 %v155
  %189 = vmatpush.bf16.msra.mxu0 %v154
  %190 = vmatpush.bf16.msra.mxu0 %v153
  %191 = vmatmul.bf16.gmra.mxu0 %v75
  %v192 = vpop.f32.mrf.mxu0
  %v193 = vadd.f32 0.0, %v192
  %v194 = vpop.f32.mrf.mxu0
  %v195 = vadd.f32 0.0, %v194
  %196 = vmatmul.bf16.gmra.mxu0 %v79
  %v197 = vpop.f32.mrf.mxu0
  %v198 = vadd.f32 0.0, %v197
  %v199 = vpop.f32.mrf.mxu0
  %v200 = vadd.f32 0.0, %v199
  %201 = vdwg.mxu0
  %202 = vmatpush.bf16.msra.mxu0 0
  %203 = vmatpush.bf16.msra.mxu0 0
  %204 = vmatpush.bf16.msra.mxu0 0
  %205 = vmatpush.bf16.msra.mxu0 0
  %206 = vmatpush.bf16.msra.mxu0 %v164
  %207 = vmatpush.bf16.msra.mxu0 %v163
  %208 = vmatpush.bf16.msra.mxu0 %v162
  %209 = vmatpush.bf16.msra.mxu0 %v161
  %210 = vmatmul.bf16.gmra.mxu0 %v178
  %v211 = vpop.f32.mrf.mxu0
  %v212 = vadd.f32 %v193, %v211
  %v213 = vpop.f32.mrf.mxu0
  %v214 = vadd.f32 %v195, %v213
  %215 = vmatmul.bf16.gmra.mxu0 %v181
  %v216 = vpop.f32.mrf.mxu0
  %v217 = vadd.f32 %v198, %v216
  %v218 = vpop.f32.mrf.mxu0
  %v219 = vadd.f32 %v200, %v218
  %220 = vdwg.mxu0
  %v221 = vmax.f32 %v212, 0.0
  %v222 = vmax.f32 %v214, 0.0
  %v223 = vmax.f32 %v217, 0.0
  %v224 = vmax.f32 %v219, 0.0
  %v225 = vmin.f32 %v221, 1.0
  %v226 = vmin.f32 %v222, 1.0
  %v227 = vmin.f32 %v223, 1.0
  %v228 = vmin.f32 %v224, 1.0
  %v229 = vpack.c.bf16 %v226, %v225
  %v230 = vpack.c.bf16 %v228, %v227
  %v231 = vld [vmem:[%s2] sm:$0xff]
  %v232 = vld [vmem:[%s2 + $0x8] sm:$0xff]
  %v233 = vld [vmem:[%s2 + $0x10] sm:$0xff]
  %v234 = vld [vmem:[%s2 + $0x18] sm:$0xff]
  %v235 = vld [vmem:[%s2 + $0x20] sm:$0xff]
  %v236 = vld [vmem:[%s2 + $0x28] sm:$0xff]
  %v237 = vld [vmem:[%s2 + $0x30] sm:$0xff]
  %v238 = vld [vmem:[%s2 + $0x38] sm:$0xff]
  %v239 = vld [vmem:[%s2 + $0x40] sm:$0xff]
  %v240 = vld [vmem:[%s2 + $0x48] sm:$0xff]
  %v241 = vld [vmem:[%s2 + $0x50] sm:$0xff]
  %v242 = vld [vmem:[%s2 + $0x58] sm:$0xff]
  %v243 = vld [vmem:[%s2 + $0x60] sm:$0xff]
  %v244 = vld [vmem:[%s2 + $0x68] sm:$0xff]
  %v245 = vld [vmem:[%s2 + $0x70] sm:$0xff]
  %v246 = vld [vmem:[%s2 + $0x78] sm:$0xff]
  %v263 = vunpack.c.l.b16 %v231
  %v264 = vunpack.c.h.b16 %v231
  %v265 = vunpack.c.l.b16 %v232
  %v266 = vunpack.c.h.b16 %v232
  %v267 = vunpack.c.l.b16 %v233
  %v268 = vunpack.c.h.b16 %v233
  %v269 = vunpack.c.l.b16 %v234
  %v270 = vunpack.c.h.b16 %v234
  %v271 = vunpack.c.l.b16 %v235
  %v272 = vunpack.c.h.b16 %v235
  %v273 = vunpack.c.l.b16 %v236
  %v274 = vunpack.c.h.b16 %v236
  %v275 = vunpack.c.l.b16 %v237
  %v276 = vunpack.c.h.b16 %v237
  %v277 = vunpack.c.l.b16 %v238
  %v278 = vunpack.c.h.b16 %v238
  %v279 = vunpack.c.l.b16 %v239
  %v280 = vunpack.c.h.b16 %v239
  %v281 = vunpack.c.l.b16 %v240
  %v282 = vunpack.c.h.b16 %v240
  %v283 = vunpack.c.l.b16 %v241
  %v284 = vunpack.c.h.b16 %v241
  %v285 = vunpack.c.l.b16 %v242
  %v286 = vunpack.c.h.b16 %v242
  %v287 = vunpack.c.l.b16 %v243
  %v288 = vunpack.c.h.b16 %v243
  %v289 = vunpack.c.l.b16 %v244
  %v290 = vunpack.c.h.b16 %v244
  %v291 = vunpack.c.l.b16 %v245
  %v292 = vunpack.c.h.b16 %v245
  %v293 = vunpack.c.l.b16 %v246
  %v294 = vunpack.c.h.b16 %v246
  %v295 = vpack.c.b16 %v265, %v263
  %v296 = vpack.c.b16 %v266, %v264
  %v297 = vpack.c.b16 %v269, %v267
  %v298 = vpack.c.b16 %v270, %v268
  %v299 = vpack.c.b16 %v273, %v271
  %v300 = vpack.c.b16 %v274, %v272
  %v301 = vpack.c.b16 %v277, %v275
  %v302 = vpack.c.b16 %v278, %v276
  %v303 = vpack.c.b16 %v281, %v279
  %v304 = vpack.c.b16 %v282, %v280
  %v305 = vpack.c.b16 %v285, %v283
  %v306 = vpack.c.b16 %v286, %v284
  %v307 = vpack.c.b16 %v289, %v287
  %v308 = vpack.c.b16 %v290, %v288
  %v309 = vpack.c.b16 %v293, %v291
  %v310 = vpack.c.b16 %v294, %v292
  %327 = vmatpush.bf16.msra.mxu0 %v309
  %328 = vmatpush.bf16.msra.mxu0 %v307
  %329 = vmatpush.bf16.msra.mxu0 %v305
  %330 = vmatpush.bf16.msra.mxu0 %v303
  %331 = vmatpush.bf16.msra.mxu0 %v301
  %332 = vmatpush.bf16.msra.mxu0 %v299
  %333 = vmatpush.bf16.msra.mxu0 %v297
  %334 = vmatpush.bf16.msra.mxu0 %v295
  %335 = vmatmul.bf16.gmra.mxu0 %v229
  %v336 = vpop.f32.mrf.mxu0
  %v337 = vadd.f32 0.0, %v336
  %v338 = vpop.f32.mrf.mxu0
  %v339 = vadd.f32 0.0, %v338
  %340 = vmatmul.bf16.gmra.mxu0 %v230
  %v341 = vpop.f32.mrf.mxu0
  %v342 = vadd.f32 0.0, %v341
  %v343 = vpop.f32.mrf.mxu0
  %v344 = vadd.f32 0.0, %v343
  %345 = vdwg.mxu0
  %346 = vmatpush.bf16.msra.mxu0 %v310
  %347 = vmatpush.bf16.msra.mxu0 %v308
  %348 = vmatpush.bf16.msra.mxu0 %v306
  %349 = vmatpush.bf16.msra.mxu0 %v304
  %350 = vmatpush.bf16.msra.mxu0 %v302
  %351 = vmatpush.bf16.msra.mxu0 %v300
  %352 = vmatpush.bf16.msra.mxu0 %v298
  %353 = vmatpush.bf16.msra.mxu0 %v296
  %354 = vmatmul.bf16.gmra.mxu0 %v229
  %v355 = vpop.f32.mrf.mxu0
  %v356 = vadd.f32 0.0, %v355
  %v357 = vpop.f32.mrf.mxu0
  %v358 = vadd.f32 0.0, %v357
  %359 = vmatmul.bf16.gmra.mxu0 %v230
  %v360 = vpop.f32.mrf.mxu0
  %v361 = vadd.f32 0.0, %v360
  %v362 = vpop.f32.mrf.mxu0
  %v363 = vadd.f32 0.0, %v362
  %364 = vdwg.mxu0
  %vm373 = vcmask 1040384
  %v374 = vrot.slane %v337, 7
  %v375 = vrot.slane %v356, 7
  %v376 = vrot.slane %v339, 7
  %v377 = vsel %vm373, %v374, %v376
  %v378 = vrot.slane %v358, 7
  %v379 = vsel %vm373, %v375, %v378
  %v380 = vrot.slane %v342, 7
  %v381 = vrot.slane %v361, 7
  %v382 = vrot.slane %v344, 7
  %v383 = vsel %vm373, %v380, %v382
  %v384 = vrot.slane %v363, 7
  %v385 = vsel %vm373, %v381, %v384
  %v394 = vsel %vm373, %v337, %v374
  %v395 = vsel %vm373, %v356, %v375
  %v396 = vsel %vm373, %v342, %v380
  %v397 = vsel %vm373, %v361, %v381
  %vm398 = vcmask 1046528
  %v399 = vrot.slane %v337, 1
  %v400 = vrot.slane %v339, 1
  %v401 = vsel %vm398, %v399, %v400
  %v402 = vrot.slane %v356, 1
  %v403 = vrot.slane %v358, 1
  %v404 = vsel %vm398, %v402, %v403
  %v405 = vrot.slane %v342, 1
  %v406 = vrot.slane %v344, 1
  %v407 = vsel %vm398, %v405, %v406
  %v408 = vrot.slane %v361, 1
  %v409 = vrot.slane %v363, 1
  %v410 = vsel %vm398, %v408, %v409
  %v419 = vsel %vm398, %v400, %v339
  %v420 = vsel %vm398, %v403, %v358
  %v421 = vsel %vm398, %v406, %v344
  %v422 = vsel %vm398, %v409, %v363
  %v423 = vmul.f32 %v337, 0.75
  %v424 = vmul.f32 %v356, 0.75
  %v425 = vmul.f32 %v339, 0.75
  %v426 = vmul.f32 %v358, 0.75
  %v427 = vmul.f32 %v342, 0.75
  %v428 = vmul.f32 %v361, 0.75
  %v429 = vmul.f32 %v344, 0.75
  %v430 = vmul.f32 %v363, 0.75
  %v431 = vmul.f32 %v394, 0.25
  %v432 = vmul.f32 %v395, 0.25
  %v433 = vmul.f32 %v377, 0.25
  %v434 = vmul.f32 %v379, 0.25
  %v435 = vmul.f32 %v396, 0.25
  %v436 = vmul.f32 %v397, 0.25
  %v437 = vmul.f32 %v383, 0.25
  %v438 = vmul.f32 %v385, 0.25
  %v439 = vadd.f32 %v423, %v431
  %v440 = vadd.f32 %v424, %v432
  %v441 = vadd.f32 %v425, %v433
  %v442 = vadd.f32 %v426, %v434
  %v443 = vadd.f32 %v427, %v435
  %v444 = vadd.f32 %v428, %v436
  %v445 = vadd.f32 %v429, %v437
  %v446 = vadd.f32 %v430, %v438
  %v447 = vmul.f32 %v401, 0.25
  %v448 = vmul.f32 %v404, 0.25
  %v449 = vmul.f32 %v419, 0.25
  %v450 = vmul.f32 %v420, 0.25
  %v451 = vmul.f32 %v407, 0.25
  %v452 = vmul.f32 %v410, 0.25
  %v453 = vmul.f32 %v421, 0.25
  %v454 = vmul.f32 %v422, 0.25
  %v455 = vadd.f32 %v423, %v447
  %v456 = vadd.f32 %v424, %v448
  %v457 = vadd.f32 %v425, %v449
  %v458 = vadd.f32 %v426, %v450
  %v459 = vadd.f32 %v427, %v451
  %v460 = vadd.f32 %v428, %v452
  %v461 = vadd.f32 %v429, %v453
  %v462 = vadd.f32 %v430, %v454
  %v463 = vld [vmem:[%s3] sm:$0xff]
  %v464 = vld [vmem:[%s3 + $0x8] sm:$0xff]
  %v465 = vld [vmem:[%s3 + $0x10] sm:$0xff]
  %v466 = vld [vmem:[%s3 + $0x18] sm:$0xff]
  %v467 = vld [vmem:[%s3 + $0x20] sm:$0xff]
  %v468 = vld [vmem:[%s3 + $0x28] sm:$0xff]
  %v469 = vld [vmem:[%s3 + $0x30] sm:$0xff]
  %v470 = vld [vmem:[%s3 + $0x38] sm:$0xff]
  %v471 = vadd.f32 %v439, %v463
  %v472 = vadd.f32 %v440, %v464
  %v473 = vadd.f32 %v441, %v465
  %v474 = vadd.f32 %v442, %v466
  %v475 = vadd.f32 %v443, %v467
  %v476 = vadd.f32 %v444, %v468
  %v477 = vadd.f32 %v445, %v469
  %v478 = vadd.f32 %v446, %v470
  %v479 = vmax.f32 %v471, 0.0
  %v480 = vmax.f32 %v472, 0.0
  %v481 = vmax.f32 %v473, 0.0
  %v482 = vmax.f32 %v474, 0.0
  %v483 = vmax.f32 %v475, 0.0
  %v484 = vmax.f32 %v476, 0.0
  %v485 = vmax.f32 %v477, 0.0
  %v486 = vmax.f32 %v478, 0.0
  %v487 = vmin.f32 %v479, 1.0
  %v488 = vmin.f32 %v480, 1.0
  %v489 = vmin.f32 %v481, 1.0
  %v490 = vmin.f32 %v482, 1.0
  %v491 = vmin.f32 %v483, 1.0
  %v492 = vmin.f32 %v484, 1.0
  %v493 = vmin.f32 %v485, 1.0
  %v494 = vmin.f32 %v486, 1.0
  %s495 = scalar_lea.vmem %s3, 64
  %v496 = vld [vmem:[%s495] sm:$0xff]
  %v497 = vld [vmem:[%s495 + $0x8] sm:$0xff]
  %v498 = vld [vmem:[%s495 + $0x10] sm:$0xff]
  %v499 = vld [vmem:[%s495 + $0x18] sm:$0xff]
  %v500 = vld [vmem:[%s495 + $0x20] sm:$0xff]
  %v501 = vld [vmem:[%s495 + $0x28] sm:$0xff]
  %v502 = vld [vmem:[%s495 + $0x30] sm:$0xff]
  %v503 = vld [vmem:[%s495 + $0x38] sm:$0xff]
  %v504 = vadd.f32 %v455, %v496
  %v505 = vadd.f32 %v456, %v497
  %v506 = vadd.f32 %v457, %v498
  %v507 = vadd.f32 %v458, %v499
  %v508 = vadd.f32 %v459, %v500
  %v509 = vadd.f32 %v460, %v501
  %v510 = vadd.f32 %v461, %v502
  %v511 = vadd.f32 %v462, %v503
  %v512 = vmax.f32 %v504, 0.0
  %v513 = vmax.f32 %v505, 0.0
  %v514 = vmax.f32 %v506, 0.0
  %v515 = vmax.f32 %v507, 0.0
  %v516 = vmax.f32 %v508, 0.0
  %v517 = vmax.f32 %v509, 0.0
  %v518 = vmax.f32 %v510, 0.0
  %v519 = vmax.f32 %v511, 0.0
  %v520 = vmin.f32 %v512, 1.0
  %v521 = vmin.f32 %v513, 1.0
  %v522 = vmin.f32 %v514, 1.0
  %v523 = vmin.f32 %v515, 1.0
  %v524 = vmin.f32 %v516, 1.0
  %v525 = vmin.f32 %v517, 1.0
  %v526 = vmin.f32 %v518, 1.0
  %v527 = vmin.f32 %v519, 1.0
  %528 = vst [vmem:[%s4] sm:$0xff] %v487
  %529 = vst [vmem:[%s4 + $0x8] sm:$0xff] %v488
  %530 = vst [vmem:[%s4 + $0x10] sm:$0xff] %v489
  %531 = vst [vmem:[%s4 + $0x18] sm:$0xff] %v490
  %532 = vst [vmem:[%s4 + $0x20] sm:$0xff] %v491
  %533 = vst [vmem:[%s4 + $0x28] sm:$0xff] %v492
  %534 = vst [vmem:[%s4 + $0x30] sm:$0xff] %v493
  %535 = vst [vmem:[%s4 + $0x38] sm:$0xff] %v494
  %s536 = scalar_lea.vmem %s4, 64
  %537 = vst [vmem:[%s536] sm:$0xff] %v520
  %538 = vst [vmem:[%s536 + $0x8] sm:$0xff] %v521
  %539 = vst [vmem:[%s536 + $0x10] sm:$0xff] %v522
  %540 = vst [vmem:[%s536 + $0x18] sm:$0xff] %v523
  %541 = vst [vmem:[%s536 + $0x20] sm:$0xff] %v524
  %542 = vst [vmem:[%s536 + $0x28] sm:$0xff] %v525
  %543 = vst [vmem:[%s536 + $0x30] sm:$0xff] %v526
  %544 = vst [vmem:[%s536 + $0x38] sm:$0xff] %v527
  // Predicated region
  $region18: #{up2x_forward.1} parent=0 // pred_check
    _
  $region19: #{up2x_forward.1} parent=0 // pred_check_branch
    %546 = sbr.rel (0) target = $region21
  $region20: #{up2x_forward.1} parent=0 // pred_region
    _
  $region21: #{up2x_forward.1} parent=0 // pred_fallthru
    _
  // Predicated region
  $region22: #{up2x_forward.1} parent=0 // pred_check
    _
  $region23: #{up2x_forward.1} parent=0 // pred_check_branch
    %548 = sbr.rel (0) target = $region25
  $region24: #{up2x_forward.1} parent=0 // pred_region
    _
  $region25: #{up2x_forward.1} parent=0 // pred_fallthru
    _

</llo_original>
